<compile_context>
chip_gen: v5e
topology: v5e:2x2
jax: 0.10.0
libtpu: 0.0.40
codegen_flags: <defaults>
</compile_context>

<pallas_src>
import functools

import jax
import jax.numpy as jnp
from jax import lax
from jax.experimental import pallas as pl
from jax.experimental.pallas import tpu as pltpu

LOG_STD_MIN = -20.0
LOG_STD_MAX = 2.0
_LANE = 128  # TPU lane width; each packed weight panel starts on a lane tile.


def _round_up(x, m):
    return (x + m - 1) // m * m


def _first_argmax(v):
    """First-max index per row (torch.argmax semantics). Returns [B, 1] int32."""
    b, a = v.shape
    col = lax.broadcasted_iota(jnp.int32, (b, a), 1)
    row_max = jnp.max(v, axis=1, keepdims=True)
    # NOTE: an all-NaN row yields the sentinel `a` -> all-zero one-hot row
    # (torch.argmax would return the NaN index). Edge case only.
    return jnp.min(jnp.where(v == row_max, col, a), axis=1, keepdims=True)


def _dqn_kernel(n_in, hidden, a_dim,
                state_ref, noise_ref, w_ref, b_ref, out_ref):
    """Fused GaussianNetwork.sample + argmax + one-hot, single invocation.

    Weight/bias slabs are lane-aligned (panel k starts at column k*128), so
    every static slice below is a tile-aligned view.  All matmuls run in f32
    with f32 accumulation (one MXU pass each at these K/N).
    """
    x = state_ref[...]                                     # f32 [B, n_in]
    noise = noise_ref[...]                                 # f32 [B, A]

    w1 = w_ref[0:n_in, 0:hidden]                           # panel 0
    w2 = w_ref[0:hidden, _LANE:_LANE + hidden]             # panel 1
    wh = w_ref[0:hidden, 2 * _LANE:4 * _LANE]              # fused mu | log_std
    b1 = b_ref[0:1, 0:hidden]
    b2 = b_ref[0:1, _LANE:_LANE + hidden]
    bh = b_ref[0:1, 2 * _LANE:4 * _LANE]
    scale = b_ref[1:2, 0:a_dim]
    bias = b_ref[2:3, 0:a_dim]

    def mm(lhs, rhs):
        return jnp.dot(lhs, rhs, preferred_element_type=jnp.float32)

    h1 = jnp.maximum(mm(x, w1) + b1, 0.0)                  # [B, hidden]
    h2 = jnp.maximum(mm(h1, w2) + b2, 0.0)                 # [B, hidden]
    head = mm(h2, wh) + bh                                 # [B, 2*128]

    # mu lives in lane-tile 0, log_std in lane-tile 1 -> both slices start on
    # a 128-lane boundary (no cross-lane rotate).
    mu = head[:, 0:a_dim]
    log_std = jnp.clip(head[:, _LANE:_LANE + a_dim], LOG_STD_MIN, LOG_STD_MAX)
    x_t = mu + jnp.exp(log_std) * noise                    # rsample
    action = jnp.tanh(x_t) * scale + bias                  # [B, A]

    idx = _first_argmax(action)                            # [B, 1] int32
    lane = lax.broadcasted_iota(jnp.int32, out_ref.shape, 1)
    out_ref[...] = (lane == idx).astype(jnp.int32)         # lane-dense one-hot


def init_params(key, n_inputs, n_outputs, hidden_dim):
    ks = jax.random.split(key, 8)

    def lin(kw, kb, fan_in, fan_out):
        lim = 1.0 / jnp.sqrt(fan_in)
        w = jax.random.uniform(kw, (fan_in, fan_out), jnp.float32, -lim, lim)
        b = jax.random.uniform(kb, (1, fan_out), jnp.float32, -lim, lim)
        return w, b

    w1, b1 = lin(ks[0], ks[1], n_inputs, hidden_dim)
    w2, b2 = lin(ks[2], ks[3], hidden_dim, hidden_dim)
    w_mu, b_mu = lin(ks[4], ks[5], hidden_dim, n_outputs)
    w_ls, b_ls = lin(ks[6], ks[7], hidden_dim, n_outputs)
    return dict(w1=w1, b1=b1, w2=w2, b2=b2,
                w_mu=w_mu, b_mu=b_mu, w_ls=w_ls, b_ls=b_ls)


def pack_params(params, scale=1.0, bias=0.0):
    """Pack weights/biases once into lane-aligned f32 slabs.

    Weight slab [R, 4*128]: panel k (w1 | w2 | w_mu | w_ls) at columns k*128.
    Bias slab   [3, 4*128]: row 0 = layer biases (same column layout),
                            row 1 = action scale (lanes 0:A),
                            row 2 = action bias  (lanes 0:A).
    """
    n_in, hidden = params["w1"].shape
    a_dim = params["w_mu"].shape[1]
    assert hidden <= _LANE and a_dim <= _LANE, "packing assumes panels <= 128 lanes"
    rows = _round_up(max(n_in, hidden), 8)

    w_slab = jnp.zeros((rows, 4 * _LANE), jnp.float32)
    w_slab = w_slab.at[:n_in, 0:hidden].set(params["w1"])
    w_slab = w_slab.at[:hidden, _LANE:_LANE + hidden].set(params["w2"])
    w_slab = w_slab.at[:hidden, 2 * _LANE:2 * _LANE + a_dim].set(params["w_mu"])
    w_slab = w_slab.at[:hidden, 3 * _LANE:3 * _LANE + a_dim].set(params["w_ls"])

    b_slab = jnp.zeros((3, 4 * _LANE), jnp.float32)
    b_slab = b_slab.at[0, 0:hidden].set(params["b1"][0])
    b_slab = b_slab.at[0, _LANE:_LANE + hidden].set(params["b2"][0])
    b_slab = b_slab.at[0, 2 * _LANE:2 * _LANE + a_dim].set(params["b_mu"][0])
    b_slab = b_slab.at[0, 3 * _LANE:3 * _LANE + a_dim].set(params["b_ls"][0])
    b_slab = b_slab.at[1, 0:a_dim].set(
        jnp.broadcast_to(jnp.asarray(scale, jnp.float32), (a_dim,)))
    b_slab = b_slab.at[2, 0:a_dim].set(
        jnp.broadcast_to(jnp.asarray(bias, jnp.float32), (a_dim,)))

    return dict(w_slab=w_slab, b_slab=b_slab,
                n_inputs=n_in, hidden=hidden, n_outputs=a_dim)


def dqn_forward(packed, state, noise):
    """DQN.forward: int32 one-hot action matrix of shape [B, n_outputs]."""
    n_in = packed["n_inputs"]
    hidden = packed["hidden"]
    a_dim = packed["n_outputs"]
    b = state.shape[0]

    vmem = pl.BlockSpec(memory_space=pltpu.MemorySpace.VMEM)
    flops = 2 * b * (n_in * hidden + hidden * hidden + hidden * 2 * _LANE)
    bytes_accessed = 4 * (state.size + noise.size + packed["w_slab"].size
                          + packed["b_slab"].size + b * _LANE)

    onehot_padded = pl.pallas_call(
        functools.partial(_dqn_kernel, n_in, hidden, a_dim),
        out_shape=jax.ShapeDtypeStruct((b, _LANE), jnp.int32),
        in_specs=[vmem, vmem, vmem, vmem],
        out_specs=vmem,
        compiler_params=pltpu.CompilerParams(vmem_limit_bytes=4 * 1024 * 1024),
        cost_estimate=pl.CostEstimate(flops=flops,
                                      transcendentals=2 * b * a_dim,
                                      bytes_accessed=bytes_accessed),
    )(state.astype(jnp.float32), noise.astype(jnp.float32),
      packed["w_slab"], packed["b_slab"])

    # Lane-dense kernel output; trim the padding lanes for the caller.
    return onehot_padded[:, :a_dim]


if __name__ == "__main__":
    n_inputs, n_outputs, hidden_dim = 16, 8, 32
    batch = 8

    key = jax.random.PRNGKey(0)
    k_param, k_state, k_noise = jax.random.split(key, 3)

    params = init_params(k_param, n_inputs, n_outputs, hidden_dim)
    packed = pack_params(params, scale=1.0, bias=0.0)
    state = jax.random.normal(k_state, (batch, n_inputs), jnp.float32)
    noise = jax.random.normal(k_noise, (batch, n_outputs), jnp.float32)

    action_hot = dqn_forward(packed, state, noise)
    jax.block_until_ready(action_hot)

    assert action_hot.shape == (batch, n_outputs)
    assert bool(jnp.all(jnp.sum(action_hot, axis=1) == 1))

    # Pure-JAX reference of GaussianNetwork.sample -> action values; the
    # kernel's chosen action must attain the per-row max (argmax may only
    # differ on exact numerical ties, which this check tolerates).
    def ref_actions(p, s, n, scale=1.0, bias=0.0):
        h1 = jax.nn.relu(s @ p["w1"] + p["b1"])
        h2 = jax.nn.relu(h1 @ p["w2"] + p["b2"])
        mu = h2 @ p["w_mu"] + p["b_mu"]
        log_std = jnp.clip(h2 @ p["w_ls"] + p["b_ls"], LOG_STD_MIN, LOG_STD_MAX)
        x_t = mu + jnp.exp(log_std) * n
        return jnp.tanh(x_t) * scale + bias

    ref_act = ref_actions(params, state, noise)
    kernel_idx = jnp.argmax(action_hot, axis=1)
    chosen = jnp.take_along_axis(ref_act, kernel_idx[:, None], axis=1)[:, 0]
    assert bool(jnp.all(chosen >= jnp.max(ref_act, axis=1) - 1e-4))

    print("KERNEL_OK")
</pallas_src>

<mosaic_0001>
module attributes {stable_mosaic.version = 11 : i64} {
  func.func @_dqn_kernel(%arg0: memref<8x16xf32, #tpu.memory_space<vmem>>, %arg1: memref<8x8xf32, #tpu.memory_space<vmem>>, %arg2: memref<32x512xf32, #tpu.memory_space<vmem>>, %arg3: memref<3x512xf32, #tpu.memory_space<vmem>>, %arg4: memref<8x128xi32, #tpu.memory_space<vmem>>) attributes {dimension_semantics = [], scalar_prefetch = 0 : i64, scratch_operands = 0 : i64, tpu.core_type = #tpu.core_type<tc>} {
    %c0 = arith.constant 0 : index
    %c0_0 = arith.constant 0 : index
    %0 = vector.load %arg0[%c0, %c0_0] : memref<8x16xf32, #tpu.memory_space<vmem>>, vector<8x16xf32>
    %c0_1 = arith.constant 0 : index
    %c0_2 = arith.constant 0 : index
    %1 = vector.load %arg1[%c0_1, %c0_2] : memref<8x8xf32, #tpu.memory_space<vmem>>, vector<8x8xf32>
    %c0_3 = arith.constant 0 : index
    %c0_4 = arith.constant 0 : index
    %2 = vector.load %arg2[%c0_3, %c0_4] : memref<32x512xf32, #tpu.memory_space<vmem>>, vector<16x32xf32>
    %c0_5 = arith.constant 0 : index
    %c128 = arith.constant 128 : index
    %3 = vector.load %arg2[%c0_5, %c128] : memref<32x512xf32, #tpu.memory_space<vmem>>, vector<32x32xf32>
    %c0_6 = arith.constant 0 : index
    %c256 = arith.constant 256 : index
    %4 = vector.load %arg2[%c0_6, %c256] : memref<32x512xf32, #tpu.memory_space<vmem>>, vector<32x256xf32>
    %c0_7 = arith.constant 0 : index
    %c0_8 = arith.constant 0 : index
    %5 = vector.load %arg3[%c0_7, %c0_8] : memref<3x512xf32, #tpu.memory_space<vmem>>, vector<1x32xf32>
    %c0_9 = arith.constant 0 : index
    %c128_10 = arith.constant 128 : index
    %6 = vector.load %arg3[%c0_9, %c128_10] : memref<3x512xf32, #tpu.memory_space<vmem>>, vector<1x32xf32>
    %c0_11 = arith.constant 0 : index
    %c256_12 = arith.constant 256 : index
    %7 = vector.load %arg3[%c0_11, %c256_12] : memref<3x512xf32, #tpu.memory_space<vmem>>, vector<1x256xf32>
    %c1 = arith.constant 1 : index
    %c0_13 = arith.constant 0 : index
    %8 = vector.load %arg3[%c1, %c0_13] : memref<3x512xf32, #tpu.memory_space<vmem>>, vector<1x8xf32>
    %c2 = arith.constant 2 : index
    %c0_14 = arith.constant 0 : index
    %9 = vector.load %arg3[%c2, %c0_14] : memref<3x512xf32, #tpu.memory_space<vmem>>, vector<1x8xf32>
    %cst = arith.constant dense<0.000000e+00> : vector<8x32xf32>
    %10 = tpu.matmul %0, %2, %cst {dimension_numbers = #tpu.dot_dimension_numbers<[1], [0], [0], [1], [0, 0, 1, 1], [], []>} : vector<8x16xf32>, vector<16x32xf32>, vector<8x32xf32> -> vector<8x32xf32>
    %11 = vector.broadcast %5 : vector<1x32xf32> to vector<8x32xf32>
    %12 = arith.addf %10, %11 : vector<8x32xf32>
    %cst_15 = arith.constant 0.000000e+00 : f32
    %13 = vector.broadcast %cst_15 : f32 to vector<8x32xf32>
    %14 = arith.maximumf %12, %13 : vector<8x32xf32>
    %cst_16 = arith.constant dense<0.000000e+00> : vector<8x32xf32>
    %15 = tpu.matmul %14, %3, %cst_16 {dimension_numbers = #tpu.dot_dimension_numbers<[1], [0], [0], [1], [0, 0, 1, 1], [], []>} : vector<8x32xf32>, vector<32x32xf32>, vector<8x32xf32> -> vector<8x32xf32>
    %16 = vector.broadcast %6 : vector<1x32xf32> to vector<8x32xf32>
    %17 = arith.addf %15, %16 : vector<8x32xf32>
    %cst_17 = arith.constant 0.000000e+00 : f32
    %18 = vector.broadcast %cst_17 : f32 to vector<8x32xf32>
    %19 = arith.maximumf %17, %18 : vector<8x32xf32>
    %cst_18 = arith.constant dense<0.000000e+00> : vector<8x256xf32>
    %20 = tpu.matmul %19, %4, %cst_18 {dimension_numbers = #tpu.dot_dimension_numbers<[1], [0], [0], [1], [0, 0, 1, 1], [], []>} : vector<8x32xf32>, vector<32x256xf32>, vector<8x256xf32> -> vector<8x256xf32>
    %21 = vector.broadcast %7 : vector<1x256xf32> to vector<8x256xf32>
    %22 = arith.addf %20, %21 : vector<8x256xf32>
    %23 = vector.extract_strided_slice %22 {offsets = [0, 0], sizes = [8, 8], strides = [1, 1]} : vector<8x256xf32> to vector<8x8xf32>
    %24 = vector.extract_strided_slice %22 {offsets = [0, 128], sizes = [8, 8], strides = [1, 1]} : vector<8x256xf32> to vector<8x8xf32>
    %cst_19 = arith.constant -2.000000e+01 : f32
    %cst_20 = arith.constant 2.000000e+00 : f32
    %25 = vector.broadcast %cst_19 : f32 to vector<8x8xf32>
    %26 = arith.maximumf %25, %24 : vector<8x8xf32>
    %27 = vector.broadcast %cst_20 : f32 to vector<8x8xf32>
    %28 = arith.minimumf %27, %26 : vector<8x8xf32>
    %29 = math.exp %28 : vector<8x8xf32>
    %30 = arith.mulf %29, %1 : vector<8x8xf32>
    %31 = arith.addf %23, %30 : vector<8x8xf32>
    %32 = math.tanh %31 : vector<8x8xf32>
    %33 = vector.broadcast %8 : vector<1x8xf32> to vector<8x8xf32>
    %34 = arith.mulf %32, %33 : vector<8x8xf32>
    %35 = vector.broadcast %9 : vector<1x8xf32> to vector<8x8xf32>
    %36 = arith.addf %34, %35 : vector<8x8xf32>
    %37 = tpu.iota {dimensions = array<i32: 1>} : vector<8x8xi32>
    %cst_21 = arith.constant dense<0xFF800000> : vector<8xf32>
    %38 = vector.multi_reduction <maximumf>, %36, %cst_21 [1] : vector<8x8xf32> to vector<8xf32>
    %39 = vector.shape_cast %38 : vector<8xf32> to vector<8x1xf32>
    %40 = vector.broadcast %39 : vector<8x1xf32> to vector<8x8xf32>
    %41 = arith.cmpf oeq, %36, %40 : vector<8x8xf32>
    %c8_i32 = arith.constant 8 : i32
    %42 = vector.broadcast %c8_i32 : i32 to vector<8x8xi32>
    %43 = arith.select %41, %37, %42 : vector<8x8xi1>, vector<8x8xi32>
    %cst_22 = arith.constant dense<2147483647> : vector<8xi32>
    %44 = vector.multi_reduction <minsi>, %43, %cst_22 [1] : vector<8x8xi32> to vector<8xi32>
    %45 = vector.shape_cast %44 : vector<8xi32> to vector<8x1xi32>
    %46 = tpu.iota {dimensions = array<i32: 1>} : vector<8x128xi32>
    %47 = vector.broadcast %45 : vector<8x1xi32> to vector<8x128xi32>
    %48 = arith.cmpi eq, %46, %47 : vector<8x128xi32>
    %49 = arith.extui %48 : vector<8x128xi1> to vector<8x128xi32>
    %c0_23 = arith.constant 0 : index
    %c0_24 = arith.constant 0 : index
    %50 = vector.load %arg4[%c0_23, %c0_24] : memref<8x128xi32, #tpu.memory_space<vmem>>, vector<8x128xi32>
    tpu.vector_store %arg4[%c0_23, %c0_24], %49 {strides = array<i32>} : memref<8x128xi32, #tpu.memory_space<vmem>>, vector<8x128xi32>,
    return
  }
}

</mosaic_0001>

<llo_original>
// kernel: tpu_custom_call.1
$region0: #{tpu_custom_call.1}
  #allocation0 [shape = 'u32[]', space=smem, size = 0x4, offset = 0x4, fixed_abs, tag = 'smem constant byte address 0x4 - core index']
  #allocation1 [shape = 'u32[72,128]{1,0:T(1,128)}', space=vmem, size = 0x9000, scoped, tag = 'internal scratch']
  %s0 = inlined_call_operand.hbm [shape: f32[8,16], index: 0, kind: input, shape index: {}]
  %s1 = inlined_call_operand.hbm [shape: f32[8,8], index: 1, kind: input, shape index: {}]
  %s2 = inlined_call_operand.hbm [shape: f32[32,512], index: 2, kind: input, shape index: {}]
  %s3 = inlined_call_operand.hbm [shape: f32[3,512], index: 3, kind: input, shape index: {}]
  %s4 = inlined_call_operand.hbm [shape: s32[8,128], index: 4, kind: output, shape index: {}]
  %s5 = sld [smem:[#allocation0]]
  $region42: #{tpu_custom_call.1} parent=0
    _
  %s7 = ssub.s32 1, %s5
  %s8 = scalar_select 0, %s7, %s5
  $region1: #{tpu_custom_call.1} parent=0
    #allocation2 [shape = 'u8[4096]{0}', space=vmem, size = 0x1000, scoped, tag = 'input window, operand 0, single buffered']
    #allocation3 [shape = 's32[1]{0}', space=sflag, size = 0x4, scoped, tag = 'scoped memory for tpu_custom_call.1']
    #allocation4 [shape = 's32[1]{0}', space=sflag, size = 0x4, scoped, tag = 'scoped memory for tpu_custom_call.1']
    #allocation5 [shape = 'u8[4096]{0}', space=vmem, size = 0x1000, scoped, tag = 'input window, operand 1, single buffered']
    #allocation6 [shape = 's32[1]{0}', space=sflag, size = 0x4, scoped, tag = 'scoped memory for tpu_custom_call.1']
    #allocation7 [shape = 'u8[65536]{0}', space=vmem, size = 0x10000, scoped, tag = 'input window, operand 2, single buffered']
    #allocation8 [shape = 'u8[8192]{0}', space=vmem, size = 0x2000, scoped, tag = 'input window, operand 3, single buffered']
    #allocation9 [shape = 's32[1]{0}', space=sflag, size = 0x4, scoped, tag = 'scoped memory for tpu_custom_call.1']
    #allocation10 [shape = 'u8[4096]{0}', space=vmem, size = 0x1000, scoped, tag = 'output window, operand 0, single buffered']
    %9 = vsyncpa [#allocation3], 0
    %10 = vsyncpa [#allocation6], 0
    %11 = vsyncpa [#allocation9], 0
    %12 = vsyncpa [#allocation4], 0
    // Predicated region
    $region2: #{tpu_custom_call.1} parent=1 // pred_check
      _
    $region3: #{tpu_custom_call.1} parent=1 // pred_check_branch
      %14 = sbr.rel (0) target = $region5
    $region4: #{tpu_custom_call.1} parent=1 // pred_region
      %16 = vsyncadd [#allocation3], 0
      %s18 = sshll.u32 %s0, 4
      %s19 = int_to_ptr.hbm [resolvable:$true] %s18
      %s20 = sshll.u32 [#allocation2], 4
      %s21 = int_to_ptr.vmem [resolvable:$true] %s20
      %23 = dma.hbm_to_vmem [thread:$0]  %s19, 128, %s21, [#allocation3]
    $region5: #{tpu_custom_call.1} parent=1 // pred_fallthru
      _
    // Predicated region
    $region6: #{tpu_custom_call.1} parent=1 // pred_check
      _
    $region7: #{tpu_custom_call.1} parent=1 // pred_check_branch
      %25 = sbr.rel (0) target = $region9
    $region8: #{tpu_custom_call.1} parent=1 // pred_region
      %27 = vsyncadd [#allocation6], 0
      %s29 = sshll.u32 %s1, 4
      %s30 = int_to_ptr.hbm [resolvable:$true] %s29
      %s31 = sshll.u32 [#allocation5], 4
      %s32 = int_to_ptr.vmem [resolvable:$true] %s31
      %34 = dma.hbm_to_vmem [thread:$0]  %s30, 128, %s32, [#allocation6]
    $region9: #{tpu_custom_call.1} parent=1 // pred_fallthru
      _
    // Predicated region
    $region10: #{tpu_custom_call.1} parent=1 // pred_check
      _
    $region11: #{tpu_custom_call.1} parent=1 // pred_check_branch
      %36 = sbr.rel (0) target = $region13
    $region12: #{tpu_custom_call.1} parent=1 // pred_region
      %38 = vsyncadd [#allocation6], 0
      %s39 = sshll.u32 %s2, 4
      %s40 = int_to_ptr.hbm [resolvable:$true] %s39
      %s41 = sshll.u32 [#allocation7], 4
      %s42 = int_to_ptr.vmem [resolvable:$true] %s41
      %47 = dma.hbm_to_vmem [thread:$0]  %s40, 2048, %s42, [#allocation6], 512, 512, 32
    $region13: #{tpu_custom_call.1} parent=1 // pred_fallthru
      _
    // Predicated region
    $region14: #{tpu_custom_call.1} parent=1 // pred_check
      _
    $region15: #{tpu_custom_call.1} parent=1 // pred_check_branch
      %49 = sbr.rel (0) target = $region17
    $region16: #{tpu_custom_call.1} parent=1 // pred_region
      %51 = vsyncadd [#allocation9], 0
      %s53 = sshll.u32 %s3, 4
      %s54 = int_to_ptr.hbm [resolvable:$true] %s53
      %s55 = sshll.u32 [#allocation8], 4
      %s56 = int_to_ptr.vmem [resolvable:$true] %s55
      %58 = dma.hbm_to_vmem [thread:$0]  %s54, 256, %s56, [#allocation9]
    $region17: #{tpu_custom_call.1} parent=1 // pred_fallthru
      _
    // Predicated region
    $region18: #{tpu_custom_call.1} parent=1 // pred_check
      _
    $region19: #{tpu_custom_call.1} parent=1 // pred_check_branch
      %60 = sbr.rel (0) target = $region21
    $region20: #{tpu_custom_call.1} parent=1 // pred_region
      %62 = dma.done [#allocation3], 128
    $region21: #{tpu_custom_call.1} parent=1 // pred_fallthru
      _
    // Predicated region
    $region22: #{tpu_custom_call.1} parent=1 // pred_check
      _
    $region23: #{tpu_custom_call.1} parent=1 // pred_check_branch
      %64 = sbr.rel (0) target = $region25
    $region24: #{tpu_custom_call.1} parent=1 // pred_region
      %66 = dma.done [#allocation6], 128
    $region25: #{tpu_custom_call.1} parent=1 // pred_fallthru
      _
    // Predicated region
    $region26: #{tpu_custom_call.1} parent=1 // pred_check
      _
    $region27: #{tpu_custom_call.1} parent=1 // pred_check_branch
      %68 = sbr.rel (0) target = $region29
    $region28: #{tpu_custom_call.1} parent=1 // pred_region
      %70 = dma.done [#allocation6], 2048
    $region29: #{tpu_custom_call.1} parent=1 // pred_fallthru
      _
    // Predicated region
    $region30: #{tpu_custom_call.1} parent=1 // pred_check
      _
    $region31: #{tpu_custom_call.1} parent=1 // pred_check_branch
      %72 = sbr.rel (0) target = $region33
    $region32: #{tpu_custom_call.1} parent=1 // pred_region
      %74 = dma.done [#allocation9], 256
    $region33: #{tpu_custom_call.1} parent=1 // pred_fallthru
      _
    %v75 = vld [vmem:[#allocation2] sm:$0xff]
    %v76 = vld [vmem:[#allocation5] sm:$0xff]
    %v77 = vld [vmem:[#allocation7] sm:$0xff]
    %v78 = vld [vmem:[#allocation7 + $0x20] sm:$0xff]
    %v79 = vld [vmem:[#allocation7 + $0x8] sm:$0xff]
    %v80 = vld [vmem:[#allocation7 + $0x28] sm:$0xff]
    %v81 = vld [vmem:[#allocation7 + $0x48] sm:$0xff]
    %v82 = vld [vmem:[#allocation7 + $0x68] sm:$0xff]
    %v83 = vld [vmem:[#allocation7 + $0x10] sm:$0xff]
    %v84 = vld [vmem:[#allocation7 + $0x18] sm:$0xff]
    %v85 = vld [vmem:[#allocation7 + $0x30] sm:$0xff]
    %v86 = vld [vmem:[#allocation7 + $0x38] sm:$0xff]
    %v87 = vld [vmem:[#allocation7 + $0x50] sm:$0xff]
    %v88 = vld [vmem:[#allocation7 + $0x58] sm:$0xff]
    %v89 = vld [vmem:[#allocation7 + $0x70] sm:$0xff]
    %v90 = vld [vmem:[#allocation7 + $0x78] sm:$0xff]
    %v91 = vld [vmem:[#allocation8] sm:$0x1]
    %v92 = vld [vmem:[#allocation8 + $0x4] sm:$0x1]
    %s93 = scalar_lea.vmem [#allocation8], 8
    %v94 = vld [vmem:[%s93] ss:$4 sm:$0x3]
    %v95 = vld [vmem:[#allocation8 + $0x1] sm:$0x1]
    %v96 = vld [vmem:[#allocation8 + $0x2] sm:$0x1]
    %v97 = vperm.slane %v91, 0
    %vm98 = vcmask 130048
    %v100 = vsel %vm98, %v75, 0
    %102 = vmatpush.msra.mxu0 0.0
    %103 = vmatpush.msra.mxu0 0.0
    %104 = vmatpush.msra.mxu0 0.0
    %105 = vmatpush.msra.mxu0 0.0
    %106 = vmatpush.msra.mxu0 0.0
    %107 = vmatpush.msra.mxu0 0.0
    %108 = vmatpush.msra.mxu0 0.0
    %109 = vmatpush.msra.mxu0 0.0
    %110 = vmatpush.msra.mxu0 0.0
    %111 = vmatpush.msra.mxu0 0.0
    %112 = vmatpush.msra.mxu0 0.0
    %113 = vmatpush.msra.mxu0 0.0
    %114 = vmatpush.msra.mxu0 0.0
    %115 = vmatpush.msra.mxu0 0.0
    %116 = vmatpush.msra.mxu0 %v78
    %117 = vmatpush.msra.mxu0 %v77
    %118 = vmatmul.f32.gmra.mxu0 %v100
    %v119 = vpop.f32.mrf.mxu0
    %v120 = vadd.f32 %v97, %v119
    %121 = vdwg.mxu0
    %v122 = vmax.f32 %v120, 0.0
    %v123 = vperm.slane %v92, 0
    %vm124 = vcmask 261120
    %v126 = vsel %vm124, %v122, 0
    %128 = vmatpush.msra.mxu0 0.0
    %129 = vmatpush.msra.mxu0 0.0
    %130 = vmatpush.msra.mxu0 0.0
    %131 = vmatpush.msra.mxu0 0.0
    %132 = vmatpush.msra.mxu0 0.0
    %133 = vmatpush.msra.mxu0 0.0
    %134 = vmatpush.msra.mxu0 0.0
    %135 = vmatpush.msra.mxu0 0.0
    %136 = vmatpush.msra.mxu0 0.0
    %137 = vmatpush.msra.mxu0 0.0
    %138 = vmatpush.msra.mxu0 0.0
    %139 = vmatpush.msra.mxu0 0.0
    %140 = vmatpush.msra.mxu0 %v82
    %141 = vmatpush.msra.mxu0 %v81
    %142 = vmatpush.msra.mxu0 %v80
    %143 = vmatpush.msra.mxu0 %v79
    %144 = vmatmul.f32.gmra.mxu0 %v126
    %v145 = vpop.f32.mrf.mxu0
    %v146 = vadd.f32 %v123, %v145
    %147 = vdwg.mxu0
    %v148 = vmax.f32 %v146, 0.0
    %v150 = vperm.slane %v94, 0
    %v151 = vperm.slane %v94, 1
    %v155 = vsel %vm124, %v148, 0
    %157 = vmatpush.msra.mxu0 0.0
    %158 = vmatpush.msra.mxu0 0.0
    %159 = vmatpush.msra.mxu0 0.0
    %160 = vmatpush.msra.mxu0 0.0
    %161 = vmatpush.msra.mxu0 0.0
    %162 = vmatpush.msra.mxu0 0.0
    %163 = vmatpush.msra.mxu0 0.0
    %164 = vmatpush.msra.mxu0 0.0
    %165 = vmatpush.msra.mxu0 0.0
    %166 = vmatpush.msra.mxu0 0.0
    %167 = vmatpush.msra.mxu0 0.0
    %168 = vmatpush.msra.mxu0 0.0
    %169 = vmatpush.msra.mxu0 %v89
    %170 = vmatpush.msra.mxu0 %v87
    %171 = vmatpush.msra.mxu0 %v85
    %172 = vmatpush.msra.mxu0 %v83
    %173 = vmatmul.f32.gmra.mxu0 %v155
    %v174 = vpop.f32.mrf.mxu0
    %v175 = vadd.f32 %v150, %v174
    %176 = vdwg.mxu0
    %177 = vmatpush.msra.mxu0 0.0
    %178 = vmatpush.msra.mxu0 0.0
    %179 = vmatpush.msra.mxu0 0.0
    %180 = vmatpush.msra.mxu0 0.0
    %181 = vmatpush.msra.mxu0 0.0
    %182 = vmatpush.msra.mxu0 0.0
    %183 = vmatpush.msra.mxu0 0.0
    %184 = vmatpush.msra.mxu0 0.0
    %185 = vmatpush.msra.mxu0 0.0
    %186 = vmatpush.msra.mxu0 0.0
    %187 = vmatpush.msra.mxu0 0.0
    %188 = vmatpush.msra.mxu0 0.0
    %189 = vmatpush.msra.mxu0 %v90
    %190 = vmatpush.msra.mxu0 %v88
    %191 = vmatpush.msra.mxu0 %v86
    %192 = vmatpush.msra.mxu0 %v84
    %193 = vmatmul.f32.gmra.mxu0 %v155
    %v194 = vpop.f32.mrf.mxu0
    %v195 = vadd.f32 %v151, %v194
    %196 = vdwg.mxu0
    %v197 = vmax.f32 %v195, -20.0
    %v198 = vmin.f32 %v197, 2.0
    %v199 = vmul.f32 %v198, 1.442695
    %v200 = vpow.pop %v199
    %v201 = vmul.f32 %v200, %v76
    %v202 = vadd.f32 %v175, %v201
    %v203 = vtanh.pop %v202
    %v204 = vperm.slane %v95, 0
    %v205 = vmul.f32 %v203, %v204
    %v206 = vperm.slane %v96, 0
    %v207 = vadd.f32 %v205, %v206
    %v208 = vlaneseq
    %v209 = vand.u32 %v208, 127
    %vm210 = vcmask 64512
    %v211 = vsel %vm210, %v207, -inf
    %212 = vmax.xlane.f32.xlu0 %v211
    %v213 = vpop.xlane.xlu0 %212
    %vm214 = vcmp.eq.f32.partialorder %v207, %v213
    %v215 = vsel %vm214, %v209, 8
    %v216 = vsel %vm210, %v215, 2147483647
    %v217 = vand.u32 %v216, 65535
    %v218 = vshra.s32 %v216, 16
    %v219 = vcvt.s32.f32 %v217
    %v220 = vcvt.s32.f32 %v218
    %221 = vmin.xlane.f32.xlu0 %v220
    %v222 = vpop.xlane.xlu0 %221
    %vm223 = vcmp.eq.f32.partialorder %v220, %v222
    %v224 = vsel %vm223, %v219, inf
    %225 = vmin.xlane.f32.xlu0 %v224
    %v226 = vpop.xlane.xlu0 %225
    %v227 = vcvt.f32.s32 %v226
    %v228 = vcvt.f32.s32 %v222
    %v229 = vshll.u32 %v228, 16
    %v230 = vadd.s32 %v229, %v227
    %vm231 = vcmp.eq.s32.totalorder %v209, %v230
    %v232 = vsel %vm231, 1, 0
    %233 = vst [vmem:[#allocation10] sm:$0xff] %v232
    // Predicated region
    $region34: #{tpu_custom_call.1} parent=1 // pred_check
      _
    $region35: #{tpu_custom_call.1} parent=1 // pred_check_branch
      %235 = sbr.rel (0) target = $region37
    $region36: #{tpu_custom_call.1} parent=1 // pred_region
      %237 = vsyncadd [#allocation4], 0
      %s239 = sshll.u32 [#allocation10], 4
      %s240 = int_to_ptr.vmem [resolvable:$true] %s239
      %s241 = sshll.u32 %s4, 4
      %s242 = int_to_ptr.hbm [resolvable:$true] %s241
      %244 = dma.vmem_to_hbm [thread:$0]  %s240, 128, %s242, [#allocation4]
    $region37: #{tpu_custom_call.1} parent=1 // pred_fallthru
      _
    // Predicated region
    $region38: #{tpu_custom_call.1} parent=1 // pred_check
      _
    $region39: #{tpu_custom_call.1} parent=1 // pred_check_branch
      %246 = sbr.rel (0) target = $region41
    $region40: #{tpu_custom_call.1} parent=1 // pred_region
      %248 = dma.done [#allocation4], 128
    $region41: #{tpu_custom_call.1} parent=1 // pred_fallthru
      _
    %249 = vsyncpa [#allocation3], 1
    %250 = vsyncpa [#allocation6], 1
    %251 = vsyncpa [#allocation9], 1
    %252 = vsyncpa [#allocation4], 1

</llo_original>
